<compile_context>
chip_gen: v6e
topology: v6e:2x2x1
jax: 0.10.0
libtpu: 0.0.40
codegen_flags: <defaults>
</compile_context>

<pallas_src>
import functools
import math

import jax
import jax.numpy as jnp
from jax.experimental import pallas as pl
from jax.experimental.pallas import tpu as pltpu


def _apply_activation(h, name):
    """Static (trace-time) activation dispatch, mirroring activation_layer()."""
    if name is None or name == "none":
        return h
    if name == "relu":
        return jnp.maximum(h, 0.0)
    if name == "sigmoid":
        return jax.nn.sigmoid(h)
    if name == "tanh":
        return jnp.tanh(h)
    if name == "leakyrelu":
        return jnp.where(h >= 0, h, 0.01 * h)  # torch default negative_slope
    if name == "dice":
        # Dice with its (untrained, zero-initialised) alpha buffer reduces to
        # sigmoid(s) * s.
        return jax.nn.sigmoid(h) * h
    raise NotImplementedError(f"activation {name} is not implemented")


def _mlp_kernel(x_ref, *refs, layer_acts):
    """Fused MLP over one (tile_m, H_in) row block.

    refs = (w0, b0, w1, b1, ..., out_ref).  Dropout layers are inference-mode
    identities, so each layer is just matmul + bias + activation; everything
    stays in VMEM between layers.
    """
    out_ref = refs[-1]
    params = refs[:-1]
    h = x_ref[...]                                     # (tm, H_in), f32
    for li, act in enumerate(layer_acts):
        w = params[2 * li][...]                        # (H_in_l, H_out_l)
        b = params[2 * li + 1][...]                    # (1,      H_out_l)
        h = jnp.dot(h, w, preferred_element_type=jnp.float32) + b
        h = _apply_activation(h, act)
    out_ref[...] = h.astype(out_ref.dtype)


def mlp_layers_forward(x, weights, biases, *, activation="relu",
                       last_activation=True, tile_m=128):
    """Forward pass of MLPLayers.

    x       : (..., H_in) array (any number of leading dims, like the module).
    weights : list of (in_i, out_i) arrays  (== torch Linear.weight.T).
    biases  : list of (out_i,) arrays.
    """
    assert len(weights) == len(biases) and len(weights) >= 1
    n_layers = len(weights)
    lead = x.shape[:-1]
    h_in = x.shape[-1]
    h_out = weights[-1].shape[1]

    # Fold all leading dims into the matmul M dimension.
    m = int(math.prod(lead)) if lead else 1
    x2 = x.reshape(m, h_in).astype(jnp.float32)

    # Per-layer activation list; drop the final one if last_activation=False.
    layer_acts = [activation] * n_layers
    if activation is not None and not last_activation:
        layer_acts[-1] = "none"
    layer_acts = tuple(a.lower() if isinstance(a, str) else a
                       for a in layer_acts)

    # Row tiling: pad M to a sublane-friendly multiple of the tile so every
    # block divides the padded array evenly.
    tm = min(tile_m, max(8, -(-m // 8) * 8))
    m_pad = -(-m // tm) * tm
    if m_pad != m:
        x2 = jnp.pad(x2, ((0, m_pad - m), (0, 0)))
    grid = (m_pad // tm,)

    # Weights/biases as full-array, constant-index VMEM blocks (biases as 2-D
    # (1, out) tiles so they broadcast over the row block in-kernel).
    w_f32 = [w.astype(jnp.float32) for w in weights]
    b_2d = [b.reshape(1, -1).astype(jnp.float32) for b in biases]

    const_spec = lambda shape: pl.BlockSpec(shape, lambda i: (0, 0))
    in_specs = [pl.BlockSpec((tm, h_in), lambda i: (i, 0))]
    operands = [x2]
    for w, b in zip(w_f32, b_2d):
        in_specs += [const_spec(w.shape), const_spec(b.shape)]
        operands += [w, b]

    kernel = functools.partial(_mlp_kernel, layer_acts=layer_acts)
    out = pl.pallas_call(
        kernel,
        out_shape=jax.ShapeDtypeStruct((m_pad, h_out), jnp.float32),
        grid=grid,
        in_specs=in_specs,
        out_specs=pl.BlockSpec((tm, h_out), lambda i: (i, 0)),
        compiler_params=pltpu.CompilerParams(
            dimension_semantics=("parallel",)),
    )(*operands)

    if m_pad != m:
        out = out[:m]
    return out.reshape(*lead, h_out)


if __name__ == "__main__":
    # MLPLayers([64, 32, 16], dropout=0.2, activation='relu') — the module's
    # own docstring example, with the batch enlarged to 256 so the parallel
    # grid has 2 even steps (one per v7x TensorCore).
    layers = [64, 32, 16]
    batch = 256

    key = jax.random.PRNGKey(0)
    keys = jax.random.split(key, 2 * (len(layers) - 1) + 1)

    weights, biases = [], []
    for li, (fin, fout) in enumerate(zip(layers[:-1], layers[1:])):
        w = (0.05 * jax.random.normal(keys[2 * li], (fin, fout))).astype(jnp.float32)
        b = (0.05 * jax.random.normal(keys[2 * li + 1], (fout,))).astype(jnp.float32)
        weights.append(w)
        biases.append(b)
    x = jax.random.normal(keys[-1], (batch, layers[0]), jnp.float32)

    out = mlp_layers_forward(x, weights, biases,
                             activation="relu", last_activation=True)
    out = jax.block_until_ready(out)

    # Pure-JAX reference (Dropout is identity in eval mode).
    ref = x
    for w, b in zip(weights, biases):
        ref = jnp.maximum(ref @ w + b, 0.0)

    assert out.shape == (batch, layers[-1])
    assert jnp.allclose(out, ref, atol=1e-5, rtol=1e-5), "mismatch vs reference"
    print("KERNEL_OK")
</pallas_src>

<mosaic_0001>
module attributes {stable_mosaic.version = 11 : i64} {
  func.func @_mlp_kernel(%arg0: i32, %arg1: memref<128x64xf32, #tpu.memory_space<vmem>>, %arg2: memref<64x32xf32, #tpu.memory_space<vmem>>, %arg3: memref<1x32xf32, #tpu.memory_space<vmem>>, %arg4: memref<32x16xf32, #tpu.memory_space<vmem>>, %arg5: memref<1x16xf32, #tpu.memory_space<vmem>>, %arg6: memref<128x16xf32, #tpu.memory_space<vmem>>) attributes {dimension_semantics = [#tpu.dimension_semantics<parallel>], iteration_bounds = array<i64: 2>, scalar_prefetch = 0 : i64, scratch_operands = 0 : i64, tpu.core_type = #tpu.core_type<tc>, window_params = [{transform_indices = @transform_0, window_bounds = array<i64: 128, 64>}, {pipeline_mode = #tpu.pipeline_mode<synchronous>, transform_indices = @transform_1, window_bounds = array<i64: 64, 32>}, {pipeline_mode = #tpu.pipeline_mode<synchronous>, transform_indices = @transform_2, window_bounds = array<i64: 1, 32>}, {pipeline_mode = #tpu.pipeline_mode<synchronous>, transform_indices = @transform_3, window_bounds = array<i64: 32, 16>}, {pipeline_mode = #tpu.pipeline_mode<synchronous>, transform_indices = @transform_4, window_bounds = array<i64: 1, 16>}, {transform_indices = @transform_5, window_bounds = array<i64: 128, 16>}]} {
    %c0 = arith.constant 0 : index
    %c0_0 = arith.constant 0 : index
    %0 = vector.load %arg1[%c0, %c0_0] : memref<128x64xf32, #tpu.memory_space<vmem>>, vector<128x64xf32>
    %c0_1 = arith.constant 0 : index
    %c0_2 = arith.constant 0 : index
    %1 = vector.load %arg2[%c0_1, %c0_2] : memref<64x32xf32, #tpu.memory_space<vmem>>, vector<64x32xf32>
    %c0_3 = arith.constant 0 : index
    %c0_4 = arith.constant 0 : index
    %2 = vector.load %arg3[%c0_3, %c0_4] : memref<1x32xf32, #tpu.memory_space<vmem>>, vector<1x32xf32>
    %cst = arith.constant dense<0.000000e+00> : vector<128x32xf32>
    %3 = tpu.matmul %0, %1, %cst {dimension_numbers = #tpu.dot_dimension_numbers<[1], [0], [0], [1], [0, 0, 1, 1], [], []>} : vector<128x64xf32>, vector<64x32xf32>, vector<128x32xf32> -> vector<128x32xf32>
    %4 = vector.broadcast %2 : vector<1x32xf32> to vector<128x32xf32>
    %5 = arith.addf %3, %4 : vector<128x32xf32>
    %cst_5 = arith.constant 0.000000e+00 : f32
    %6 = vector.broadcast %cst_5 : f32 to vector<128x32xf32>
    %7 = arith.maximumf %5, %6 : vector<128x32xf32>
    %c0_6 = arith.constant 0 : index
    %c0_7 = arith.constant 0 : index
    %8 = vector.load %arg4[%c0_6, %c0_7] : memref<32x16xf32, #tpu.memory_space<vmem>>, vector<32x16xf32>
    %c0_8 = arith.constant 0 : index
    %c0_9 = arith.constant 0 : index
    %9 = vector.load %arg5[%c0_8, %c0_9] : memref<1x16xf32, #tpu.memory_space<vmem>>, vector<1x16xf32>
    %cst_10 = arith.constant dense<0.000000e+00> : vector<128x16xf32>
    %10 = tpu.matmul %7, %8, %cst_10 {dimension_numbers = #tpu.dot_dimension_numbers<[1], [0], [0], [1], [0, 0, 1, 1], [], []>} : vector<128x32xf32>, vector<32x16xf32>, vector<128x16xf32> -> vector<128x16xf32>
    %11 = vector.broadcast %9 : vector<1x16xf32> to vector<128x16xf32>
    %12 = arith.addf %10, %11 : vector<128x16xf32>
    %cst_11 = arith.constant 0.000000e+00 : f32
    %13 = vector.broadcast %cst_11 : f32 to vector<128x16xf32>
    %14 = arith.maximumf %12, %13 : vector<128x16xf32>
    %c0_12 = arith.constant 0 : index
    %c0_13 = arith.constant 0 : index
    %15 = vector.load %arg6[%c0_12, %c0_13] : memref<128x16xf32, #tpu.memory_space<vmem>>, vector<128x16xf32>
    tpu.vector_store %arg6[%c0_12, %c0_13], %14 {strides = array<i32>} : memref<128x16xf32, #tpu.memory_space<vmem>>, vector<128x16xf32>,
    return
  }
  func.func @transform_0(%arg0: i32) -> (i32, i32) {
    %c0_i32 = arith.constant 0 : i32
    %c0_i32_0 = arith.constant 0 : i32
    return %arg0, %c0_i32 : i32, i32
  }
  func.func @transform_1(%arg0: i32) -> (i32, i32) {
    %c0_i32 = arith.constant 0 : i32
    %c0_i32_0 = arith.constant 0 : i32
    %c0_i32_1 = arith.constant 0 : i32
    return %c0_i32, %c0_i32_0 : i32, i32
  }
  func.func @transform_2(%arg0: i32) -> (i32, i32) {
    %c0_i32 = arith.constant 0 : i32
    %c0_i32_0 = arith.constant 0 : i32
    %c0_i32_1 = arith.constant 0 : i32
    return %c0_i32, %c0_i32_0 : i32, i32
  }
  func.func @transform_3(%arg0: i32) -> (i32, i32) {
    %c0_i32 = arith.constant 0 : i32
    %c0_i32_0 = arith.constant 0 : i32
    %c0_i32_1 = arith.constant 0 : i32
    return %c0_i32, %c0_i32_0 : i32, i32
  }
  func.func @transform_4(%arg0: i32) -> (i32, i32) {
    %c0_i32 = arith.constant 0 : i32
    %c0_i32_0 = arith.constant 0 : i32
    %c0_i32_1 = arith.constant 0 : i32
    return %c0_i32, %c0_i32_0 : i32, i32
  }
  func.func @transform_5(%arg0: i32) -> (i32, i32) {
    %c0_i32 = arith.constant 0 : i32
    %c0_i32_0 = arith.constant 0 : i32
    return %arg0, %c0_i32 : i32, i32
  }
}

</mosaic_0001>

<llo_original>
// kernel: tpu_custom_call.1
$region0: #{tpu_custom_call.1}
  #allocation0 [shape = 'u32[]', space=smem, size = 0x4, offset = 0x4, fixed_abs, tag = 'smem constant byte address 0x4 - core index']
  #allocation1 [shape = 'u32[144,128]{1,0:T(1,128)}', space=vmem, size = 0x12000, scoped, tag = 'internal scratch']
  %s0 = inlined_call_operand.vmem [shape: f32[256,64], index: 0, kind: input, shape index: {}]
  %s1 = inlined_call_operand.vmem [shape: f32[64,32], index: 1, kind: input, shape index: {}]
  %s2 = inlined_call_operand.vmem [shape: f32[1,32], index: 2, kind: input, shape index: {}]
  %s3 = inlined_call_operand.vmem [shape: f32[32,16], index: 3, kind: input, shape index: {}]
  %s4 = inlined_call_operand.vmem [shape: f32[1,16], index: 4, kind: input, shape index: {}]
  %s5 = inlined_call_operand.vmem [shape: f32[256,16], index: 5, kind: output, shape index: {}]
  %s6 = sld [smem:[#allocation0]]
  $region53: #{tpu_custom_call.1} parent=0
    _
  %s8 = ssub.s32 1, %s6
  %s9 = scalar_select 0, %s8, %s6
  loop: start=0, step=1, limit=4
  $region2: #{tpu_custom_call.1} parent=0 // loop_pre_header
    _
  $region3: #{tpu_custom_call.1} parent=0 // loop_header
    %s11 = sphi 0, %s15
    %p12 = scmp.ge.s32.totalorder %s11, 4
    %s21 = sphi 0, %s23
    %s24 = sphi 0, %s21
    %s25 = sphi 0, %s24
    %s41 = sphi 0, %s25
    %s45 = sphi 0, %s45
    %s47 = sphi 0, %s45
    %s48 = sphi 0, %s47
    %s62 = sphi 0, %s48
    %s66 = sphi 0, %s66
    %s68 = sphi 0, %s66
    %s69 = sphi 0, %s68
    %s83 = sphi 0, %s69
    %s87 = sphi 0, %s87
    %s89 = sphi 0, %s87
    %s90 = sphi 0, %s89
    %s104 = sphi 0, %s90
    %s108 = sphi 0, %s108
    %s110 = sphi 0, %s108
    %s111 = sphi 0, %s110
    %s125 = sphi 0, %s111
    %s131 = sphi 0, %s133
    %s134 = sphi 0, %s131
    %s135 = sphi 0, %s134
    %s151 = sphi 0, %s135
  $region4: #{tpu_custom_call.1} parent=0 // loop_header_branch
    %14 = sbr.rel (%p12) target = $region8
  $region5: #{tpu_custom_call.1} parent=0 // loop_body
    %s16 = ssub.s32 %s11, 1
    %s17 = ssub.s32 %s11, 2
    %s18 = sadd.s32 %s11, 1
    %s19 = ssub.s32 %s11, %s18
    %p20 = scmp.eq.s32.totalorder %s19, 0
    %s22 = sadd.s32 %s21, 1
    %s23 = scalar_select %p20, %s21, %s22
    %p26 = pneg %p20
    %p27 = scmp.eq.s32.totalorder %s11, 1
    %p28 = por %p26, %p27
    %p29 = scmp.ne.s32.totalorder %s21, %s24
    %p30 = scmp.eq.s32.totalorder %s11, 0
    %p31 = por %p29, %p30
    %p32 = scmp.ne.s32.totalorder %s21, %s24
    %p33 = scmp.eq.s32.totalorder %s16, 1
    %p34 = por %p32, %p33
    %p35 = scmp.ne.s32.totalorder %s24, %s25
    %p36 = scmp.eq.s32.totalorder %s16, 0
    %p37 = por %p35, %p36
    %p38 = scmp.ne.s32.totalorder %s24, %s25
    %p39 = scmp.eq.s32.totalorder %s17, 1
    %p40 = por %p38, %p39
    %p42 = scmp.ne.s32.totalorder %s25, %s41
    %p43 = scmp.eq.s32.totalorder %s17, 0
    %p44 = por %p42, %p43
    %s46 = sadd.s32 %s45, 1
    %p49 = scmp.eq.s32.totalorder %s11, 1
    %p50 = scmp.ne.s32.totalorder %s45, %s47
    %p51 = scmp.eq.s32.totalorder %s11, 0
    %p52 = por %p50, %p51
    %p53 = scmp.ne.s32.totalorder %s45, %s47
    %p54 = scmp.eq.s32.totalorder %s16, 1
    %p55 = por %p53, %p54
    %p56 = scmp.ne.s32.totalorder %s47, %s48
    %p57 = scmp.eq.s32.totalorder %s16, 0
    %p58 = por %p56, %p57
    %p59 = scmp.ne.s32.totalorder %s47, %s48
    %p60 = scmp.eq.s32.totalorder %s17, 1
    %p61 = por %p59, %p60
    %p63 = scmp.ne.s32.totalorder %s48, %s62
    %p64 = scmp.eq.s32.totalorder %s17, 0
    %p65 = por %p63, %p64
    %s67 = sadd.s32 %s66, 1
    %p70 = scmp.eq.s32.totalorder %s11, 1
    %p71 = scmp.ne.s32.totalorder %s66, %s68
    %p72 = scmp.eq.s32.totalorder %s11, 0
    %p73 = por %p71, %p72
    %p74 = scmp.ne.s32.totalorder %s66, %s68
    %p75 = scmp.eq.s32.totalorder %s16, 1
    %p76 = por %p74, %p75
    %p77 = scmp.ne.s32.totalorder %s68, %s69
    %p78 = scmp.eq.s32.totalorder %s16, 0
    %p79 = por %p77, %p78
    %p80 = scmp.ne.s32.totalorder %s68, %s69
    %p81 = scmp.eq.s32.totalorder %s17, 1
    %p82 = por %p80, %p81
    %p84 = scmp.ne.s32.totalorder %s69, %s83
    %p85 = scmp.eq.s32.totalorder %s17, 0
    %p86 = por %p84, %p85
    %s88 = sadd.s32 %s87, 1
    %p91 = scmp.eq.s32.totalorder %s11, 1
    %p92 = scmp.ne.s32.totalorder %s87, %s89
    %p93 = scmp.eq.s32.totalorder %s11, 0
    %p94 = por %p92, %p93
    %p95 = scmp.ne.s32.totalorder %s87, %s89
    %p96 = scmp.eq.s32.totalorder %s16, 1
    %p97 = por %p95, %p96
    %p98 = scmp.ne.s32.totalorder %s89, %s90
    %p99 = scmp.eq.s32.totalorder %s16, 0
    %p100 = por %p98, %p99
    %p101 = scmp.ne.s32.totalorder %s89, %s90
    %p102 = scmp.eq.s32.totalorder %s17, 1
    %p103 = por %p101, %p102
    %p105 = scmp.ne.s32.totalorder %s90, %s104
    %p106 = scmp.eq.s32.totalorder %s17, 0
    %p107 = por %p105, %p106
    %s109 = sadd.s32 %s108, 1
    %p112 = scmp.eq.s32.totalorder %s11, 1
    %p113 = scmp.ne.s32.totalorder %s108, %s110
    %p114 = scmp.eq.s32.totalorder %s11, 0
    %p115 = por %p113, %p114
    %p116 = scmp.ne.s32.totalorder %s108, %s110
    %p117 = scmp.eq.s32.totalorder %s16, 1
    %p118 = por %p116, %p117
    %p119 = scmp.ne.s32.totalorder %s110, %s111
    %p120 = scmp.eq.s32.totalorder %s16, 0
    %p121 = por %p119, %p120
    %p122 = scmp.ne.s32.totalorder %s110, %s111
    %p123 = scmp.eq.s32.totalorder %s17, 1
    %p124 = por %p122, %p123
    %p126 = scmp.ne.s32.totalorder %s111, %s125
    %p127 = scmp.eq.s32.totalorder %s17, 0
    %p128 = por %p126, %p127
    %s129 = ssub.s32 %s11, %s18
    %p130 = scmp.eq.s32.totalorder %s129, 0
    %s132 = sadd.s32 %s131, 1
    %s133 = scalar_select %p130, %s131, %s132
    %p136 = pneg %p130
    %p137 = scmp.eq.s32.totalorder %s11, 1
    %p138 = por %p136, %p137
    %p139 = scmp.ne.s32.totalorder %s131, %s134
    %p140 = scmp.eq.s32.totalorder %s11, 0
    %p141 = por %p139, %p140
    %p142 = scmp.ne.s32.totalorder %s131, %s134
    %p143 = scmp.eq.s32.totalorder %s16, 1
    %p144 = por %p142, %p143
    %p145 = scmp.ne.s32.totalorder %s134, %s135
    %p146 = scmp.eq.s32.totalorder %s16, 0
    %p147 = por %p145, %p146
    %p148 = scmp.ne.s32.totalorder %s134, %s135
    %p149 = scmp.eq.s32.totalorder %s17, 1
    %p150 = por %p148, %p149
    %p152 = scmp.ne.s32.totalorder %s135, %s151
    %p153 = scmp.eq.s32.totalorder %s17, 0
    %p154 = por %p152, %p153
    %p155 = scmp.le.s32.totalorder 1, %s11
    %p156 = scmp.lt.s32.totalorder %s11, 3
    %p157 = pnand %p155, %p156
    %p158 = pneg %p157
    // Predicated region
    $region9: #{tpu_custom_call.1} parent=5 // pred_check
      _
    $region10: #{tpu_custom_call.1} parent=5 // pred_check_branch
      %160 = sbr.rel (%p157) target = $region12
    $region11: #{tpu_custom_call.1} parent=5 // pred_region
      %s161 = ssub.s32 %s11, 1
      // Predicated region
      $region13: #{tpu_custom_call.1} parent=11 // pred_check
        %p162 = pneg %p58
      $region14: #{tpu_custom_call.1} parent=11 // pred_check_branch
        %164 = sbr.rel (%p162) target = $region16
      $region15: #{tpu_custom_call.1} parent=11 // pred_region
        _
      $region16: #{tpu_custom_call.1} parent=11 // pred_fallthru
        _
      // Predicated region
      $region17: #{tpu_custom_call.1} parent=11 // pred_check
        %p165 = pneg %p79
      $region18: #{tpu_custom_call.1} parent=11 // pred_check_branch
        %167 = sbr.rel (%p165) target = $region20
      $region19: #{tpu_custom_call.1} parent=11 // pred_region
        _
      $region20: #{tpu_custom_call.1} parent=11 // pred_fallthru
        _
      // Predicated region
      $region21: #{tpu_custom_call.1} parent=11 // pred_check
        %p168 = pneg %p100
      $region22: #{tpu_custom_call.1} parent=11 // pred_check_branch
        %170 = sbr.rel (%p168) target = $region24
      $region23: #{tpu_custom_call.1} parent=11 // pred_region
        _
      $region24: #{tpu_custom_call.1} parent=11 // pred_fallthru
        _
      // Predicated region
      $region25: #{tpu_custom_call.1} parent=11 // pred_check
        %p171 = pneg %p121
      $region26: #{tpu_custom_call.1} parent=11 // pred_check_branch
        %173 = sbr.rel (%p171) target = $region28
      $region27: #{tpu_custom_call.1} parent=11 // pred_region
        _
      $region28: #{tpu_custom_call.1} parent=11 // pred_fallthru
        _
    $region12: #{tpu_custom_call.1} parent=5 // pred_fallthru
      _
    %p174 = scmp.lt.s32.totalorder %s11, 2
    // Predicated region
    $region29: #{tpu_custom_call.1} parent=5 // pred_check
      %p175 = pneg %p174
    $region30: #{tpu_custom_call.1} parent=5 // pred_check_branch
      %177 = sbr.rel (%p175) target = $region32
    $region31: #{tpu_custom_call.1} parent=5 // pred_region
      // Predicated region
      $region33: #{tpu_custom_call.1} parent=31 // pred_check
        %p178 = pneg %p31
      $region34: #{tpu_custom_call.1} parent=31 // pred_check_branch
        %180 = sbr.rel (%p178) target = $region36
      $region35: #{tpu_custom_call.1} parent=31 // pred_region
        %s181 = smul.u32 16, %s11
        %p182 = scmp.lt.s32.totalorder %s181, 31
        %s183 = scalar_select %p182, %s181, 31
        %s184 = smul.addr %s183, 8
        %s185 = scalar_lea.vmem %s0, %s184
        %s186 = smul.u32 16, %s11
      $region36: #{tpu_custom_call.1} parent=31 // pred_fallthru
        _
    $region32: #{tpu_custom_call.1} parent=5 // pred_fallthru
      _
    %p187 = scmp.le.s32.totalorder 1, %s11
    %p188 = scmp.lt.s32.totalorder %s11, 3
    %p189 = pnand %p187, %p188
    %p190 = pneg %p189
    // Predicated region
    $region37: #{tpu_custom_call.1} parent=5 // pred_check
      _
    $region38: #{tpu_custom_call.1} parent=5 // pred_check_branch
      %192 = sbr.rel (%p189) target = $region40
    $region39: #{tpu_custom_call.1} parent=5 // pred_region
      %s193 = ssub.s32 %s11, 1
      %s194 = smul.u32 16, %s16
      %p195 = scmp.lt.s32.totalorder %s194, 31
      %s196 = scalar_select %p195, %s194, 31
      %s197 = smul.addr %s196, 8
      %s198 = scalar_lea.vmem %s0, %s197
      %p199 = pneg %p37
      %p200 = pneg %p34
      %p201 = pneg %p58
      %p202 = pneg %p55
      %p203 = pneg %p79
      %p204 = pneg %p76
      %p205 = pneg %p100
      %p206 = pneg %p97
      %p207 = pneg %p121
      %p208 = pneg %p118
      %p209 = pneg %p147
      %p210 = pneg %p144
      %s211 = smul.u32 16, %s16
      %p212 = scmp.lt.s32.totalorder %s211, 31
      %s213 = scalar_select %p212, %s211, 31
      %s214 = smul.addr %s213, 8
      %s215 = scalar_lea.vmem %s5, %s214
      %s216 = smul.u32 16, %s16
      %p217 = scmp.lt.s32.totalorder %s216, 31
      %s218 = scalar_select %p217, %s216, 31
      %s219 = smul.addr %s218, 8
      %s220 = scalar_lea.vmem %s0, %s219
      %s221 = smul.u32 16, %s16
      %s222 = smul.u32 16, %s16
      %p223 = scmp.lt.s32.totalorder %s222, 31
      %s224 = scalar_select %p223, %s222, 31
      %s225 = smul.addr %s224, 8
      %s226 = scalar_lea.vmem %s5, %s225
      %s227 = smul.u32 16, %s16
      %v228 = vld [vmem:[%s220] sm:$0xff]
      %v229 = vld [vmem:[%s220 + $0x8] sm:$0xff]
      %v230 = vld [vmem:[%s220 + $0x10] sm:$0xff]
      %v231 = vld [vmem:[%s220 + $0x18] sm:$0xff]
      %v232 = vld [vmem:[%s220 + $0x20] sm:$0xff]
      %v233 = vld [vmem:[%s220 + $0x28] sm:$0xff]
      %v234 = vld [vmem:[%s220 + $0x30] sm:$0xff]
      %v235 = vld [vmem:[%s220 + $0x38] sm:$0xff]
      %v236 = vld [vmem:[%s220 + $0x40] sm:$0xff]
      %v237 = vld [vmem:[%s220 + $0x48] sm:$0xff]
      %v238 = vld [vmem:[%s220 + $0x50] sm:$0xff]
      %v239 = vld [vmem:[%s220 + $0x58] sm:$0xff]
      %v240 = vld [vmem:[%s220 + $0x60] sm:$0xff]
      %v241 = vld [vmem:[%s220 + $0x68] sm:$0xff]
      %v242 = vld [vmem:[%s220 + $0x70] sm:$0xff]
      %v243 = vld [vmem:[%s220 + $0x78] sm:$0xff]
      %v244 = vld [vmem:[%s1] sm:$0xff]
      %v245 = vld [vmem:[%s1 + $0x8] sm:$0xff]
      %v246 = vld [vmem:[%s1 + $0x10] sm:$0xff]
      %v247 = vld [vmem:[%s1 + $0x18] sm:$0xff]
      %v248 = vld [vmem:[%s1 + $0x20] sm:$0xff]
      %v249 = vld [vmem:[%s1 + $0x28] sm:$0xff]
      %v250 = vld [vmem:[%s1 + $0x30] sm:$0xff]
      %v251 = vld [vmem:[%s1 + $0x38] sm:$0xff]
      %v252 = vld [vmem:[%s2] sm:$0x1]
      %v254 = vlaneseq
      %v255 = vshrl.u32 %v254, 7
      %v256 = vsub.s32 0, %v255
      %v257 = vrot.slane %v252, %v256
      %vm259 = vcmask 523264
      %v261 = vsel %vm259, %v228, 0
      %v264 = vsel %vm259, %v229, 0
      %v267 = vsel %vm259, %v230, 0
      %v270 = vsel %vm259, %v231, 0
      %v273 = vsel %vm259, %v232, 0
      %v276 = vsel %vm259, %v233, 0
      %v279 = vsel %vm259, %v234, 0
      %v282 = vsel %vm259, %v235, 0
      %v285 = vsel %vm259, %v236, 0
      %v288 = vsel %vm259, %v237, 0
      %v291 = vsel %vm259, %v238, 0
      %v294 = vsel %vm259, %v239, 0
      %v297 = vsel %vm259, %v240, 0
      %v300 = vsel %vm259, %v241, 0
      %v303 = vsel %vm259, %v242, 0
      %v306 = vsel %vm259, %v243, 0
      %308 = vmatprep.subr.mxu0 0.0
      %309 = vmatpush1.msra.mxu0 0.0
      %310 = vmatprep.subr.mxu0 0.0
      %311 = vmatpush1.msra.mxu0 0.0
      %312 = vmatprep.subr.mxu0 0.0
      %313 = vmatpush1.msra.mxu0 0.0
      %314 = vmatprep.subr.mxu0 0.0
      %315 = vmatpush1.msra.mxu0 0.0
      %316 = vmatprep.subr.mxu0 0.0
      %317 = vmatpush1.msra.mxu0 0.0
      %318 = vmatprep.subr.mxu0 0.0
      %319 = vmatpush1.msra.mxu0 0.0
      %320 = vmatprep.subr.mxu0 0.0
      %321 = vmatpush1.msra.mxu0 0.0
      %322 = vmatprep.subr.mxu0 0.0
      %323 = vmatpush1.msra.mxu0 0.0
      %324 = vmatprep.subr.mxu0 0.0
      %325 = vmatpush1.msra.mxu0 %v251
      %326 = vmatprep.subr.mxu0 0.0
      %327 = vmatpush1.msra.mxu0 %v250
      %328 = vmatprep.subr.mxu0 0.0
      %329 = vmatpush1.msra.mxu0 %v249
      %330 = vmatprep.subr.mxu0 0.0
      %331 = vmatpush1.msra.mxu0 %v248
      %332 = vmatprep.subr.mxu0 0.0
      %333 = vmatpush1.msra.mxu0 %v247
      %334 = vmatprep.subr.mxu0 0.0
      %335 = vmatpush1.msra.mxu0 %v246
      %336 = vmatprep.subr.mxu0 0.0
      %337 = vmatpush1.msra.mxu0 %v245
      %338 = vmatprep.subr.mxu0 0.0
      %339 = vmatpush1.msra.mxu0 %v244
      %340 = vmatprep.subr.mxu0 0.0
      %341 = vmatpush2.msra.mxu0 0.0
      %342 = vmatprep.subr.mxu0 0.0
      %343 = vmatpush2.msra.mxu0 0.0
      %344 = vmatprep.subr.mxu0 0.0
      %345 = vmatpush2.msra.mxu0 0.0
      %346 = vmatprep.subr.mxu0 0.0
      %347 = vmatpush2.msra.mxu0 0.0
      %348 = vmatprep.subr.mxu0 0.0
      %349 = vmatpush2.msra.mxu0 0.0
      %350 = vmatprep.subr.mxu0 0.0
      %351 = vmatpush2.msra.mxu0 0.0
      %352 = vmatprep.subr.mxu0 0.0
      %353 = vmatpush2.msra.mxu0 0.0
      %354 = vmatprep.subr.mxu0 0.0
      %355 = vmatpush2.msra.mxu0 0.0
      %356 = vmatprep.subr.mxu0 0.0
      %357 = vmatpush2.msra.mxu0 0.0
      %358 = vmatprep.subr.mxu0 0.0
      %359 = vmatpush2.msra.mxu0 0.0
      %360 = vmatprep.subr.mxu0 0.0
      %361 = vmatpush2.msra.mxu0 0.0
      %362 = vmatprep.subr.mxu0 0.0
      %363 = vmatpush2.msra.mxu0 0.0
      %364 = vmatprep.subr.mxu0 0.0
      %365 = vmatpush2.msra.mxu0 0.0
      %366 = vmatprep.subr.mxu0 0.0
      %367 = vmatpush2.msra.mxu0 0.0
      %368 = vmatprep.subr.mxu0 0.0
      %369 = vmatpush2.msra.mxu0 0.0
      %370 = vmatprep.subr.mxu0 0.0
      %371 = vmatpush2.msra.mxu0 0.0
      %372 = vmatprep.mubr.f32.mxu0 0.0
      %373 = vmatmul.mubr.f32.gmra.mxu0 %v261
      %v374 = vpop.f32.mrf.mxu0
      %v375 = vadd.f32 %v257, %v374
      %v376 = vpop.f32.mrf.mxu0
      %377 = vmatprep.mubr.f32.mxu0 0.0
      %378 = vmatmul.mubr.f32.gmra.mxu0 %v264
      %v379 = vpop.f32.mrf.mxu0
      %v380 = vadd.f32 %v257, %v379
      %v381 = vpop.f32.mrf.mxu0
      %382 = vmatprep.mubr.f32.mxu0 0.0
      %383 = vmatmul.mubr.f32.gmra.mxu0 %v267
      %v384 = vpop.f32.mrf.mxu0
      %v385 = vadd.f32 %v257, %v384
      %v386 = vpop.f32.mrf.mxu0
      %387 = vmatprep.mubr.f32.mxu0 0.0
      %388 = vmatmul.mubr.f32.gmra.mxu0 %v270
      %v389 = vpop.f32.mrf.mxu0
      %v390 = vadd.f32 %v257, %v389
      %v391 = vpop.f32.mrf.mxu0
      %392 = vmatprep.mubr.f32.mxu0 0.0
      %393 = vmatmul.mubr.f32.gmra.mxu0 %v273
      %v394 = vpop.f32.mrf.mxu0
      %v395 = vadd.f32 %v257, %v394
      %v396 = vpop.f32.mrf.mxu0
      %397 = vmatprep.mubr.f32.mxu0 0.0
      %398 = vmatmul.mubr.f32.gmra.mxu0 %v276
      %v399 = vpop.f32.mrf.mxu0
      %v400 = vadd.f32 %v257, %v399
      %v401 = vpop.f32.mrf.mxu0
      %402 = vmatprep.mubr.f32.mxu0 0.0
      %403 = vmatmul.mubr.f32.gmra.mxu0 %v279
      %v404 = vpop.f32.mrf.mxu0
      %v405 = vadd.f32 %v257, %v404
      %v406 = vpop.f32.mrf.mxu0
      %407 = vmatprep.mubr.f32.mxu0 0.0
      %408 = vmatmul.mubr.f32.gmra.mxu0 %v282
      %v409 = vpop.f32.mrf.mxu0
      %v410 = vadd.f32 %v257, %v409
      %v411 = vpop.f32.mrf.mxu0
      %412 = vmatprep.mubr.f32.mxu0 0.0
      %413 = vmatmul.mubr.f32.gmra.mxu0 %v285
      %v414 = vpop.f32.mrf.mxu0
      %v415 = vadd.f32 %v257, %v414
      %v416 = vpop.f32.mrf.mxu0
      %417 = vmatprep.mubr.f32.mxu0 0.0
      %418 = vmatmul.mubr.f32.gmra.mxu0 %v288
      %v419 = vpop.f32.mrf.mxu0
      %v420 = vadd.f32 %v257, %v419
      %v421 = vpop.f32.mrf.mxu0
      %422 = vmatprep.mubr.f32.mxu0 0.0
      %423 = vmatmul.mubr.f32.gmra.mxu0 %v291
      %v424 = vpop.f32.mrf.mxu0
      %v425 = vadd.f32 %v257, %v424
      %v426 = vpop.f32.mrf.mxu0
      %427 = vmatprep.mubr.f32.mxu0 0.0
      %428 = vmatmul.mubr.f32.gmra.mxu0 %v294
      %v429 = vpop.f32.mrf.mxu0
      %v430 = vadd.f32 %v257, %v429
      %v431 = vpop.f32.mrf.mxu0
      %432 = vmatprep.mubr.f32.mxu0 0.0
      %433 = vmatmul.mubr.f32.gmra.mxu0 %v297
      %v434 = vpop.f32.mrf.mxu0
      %v435 = vadd.f32 %v257, %v434
      %v436 = vpop.f32.mrf.mxu0
      %437 = vmatprep.mubr.f32.mxu0 0.0
      %438 = vmatmul.mubr.f32.gmra.mxu0 %v300
      %v439 = vpop.f32.mrf.mxu0
      %v440 = vadd.f32 %v257, %v439
      %v441 = vpop.f32.mrf.mxu0
      %442 = vmatprep.mubr.f32.mxu0 0.0
      %443 = vmatmul.mubr.f32.gmra.mxu0 %v303
      %v444 = vpop.f32.mrf.mxu0
      %v445 = vadd.f32 %v257, %v444
      %v446 = vpop.f32.mrf.mxu0
      %447 = vmatprep.mubr.f32.mxu0 0.0
      %448 = vmatmul.mubr.f32.gmra.mxu0 %v306
      %v449 = vpop.f32.mrf.mxu0
      %v450 = vadd.f32 %v257, %v449
      %v451 = vpop.f32.mrf.mxu0
      %452 = vdwg.mxu0
      %v453 = vmax.f32 %v375, 0.0
      %v454 = vmax.f32 %v380, 0.0
      %v455 = vmax.f32 %v385, 0.0
      %v456 = vmax.f32 %v390, 0.0
      %v457 = vmax.f32 %v395, 0.0
      %v458 = vmax.f32 %v400, 0.0
      %v459 = vmax.f32 %v405, 0.0
      %v460 = vmax.f32 %v410, 0.0
      %v461 = vmax.f32 %v415, 0.0
      %v462 = vmax.f32 %v420, 0.0
      %v463 = vmax.f32 %v425, 0.0
      %v464 = vmax.f32 %v430, 0.0
      %v465 = vmax.f32 %v435, 0.0
      %v466 = vmax.f32 %v440, 0.0
      %v467 = vmax.f32 %v445, 0.0
      %v468 = vmax.f32 %v450, 0.0
      %v469 = vld [vmem:[%s3] sm:$0xff]
      %v470 = vld [vmem:[%s3 + $0x8] sm:$0xff]
      %v471 = vld [vmem:[%s3 + $0x10] sm:$0xff]
      %v472 = vld [vmem:[%s3 + $0x18] sm:$0xff]
      %v473 = vld [vmem:[%s4] sm:$0x1]
      %v475 = vlaneseq
      %v476 = vshrl.u32 %v475, 7
      %v477 = vsub.s32 0, %v476
      %v478 = vrot.slane %v473, %v477
      %vm480 = vcmask 261120
      %v482 = vsel %vm480, %v453, 0
      %v485 = vsel %vm480, %v454, 0
      %v488 = vsel %vm480, %v455, 0
      %v491 = vsel %vm480, %v456, 0
      %v494 = vsel %vm480, %v457, 0
      %v497 = vsel %vm480, %v458, 0
      %v500 = vsel %vm480, %v459, 0
      %v503 = vsel %vm480, %v460, 0
      %v506 = vsel %vm480, %v461, 0
      %v509 = vsel %vm480, %v462, 0
      %v512 = vsel %vm480, %v463, 0
      %v515 = vsel %vm480, %v464, 0
      %v518 = vsel %vm480, %v465, 0
      %v521 = vsel %vm480, %v466, 0
      %v524 = vsel %vm480, %v467, 0
      %v527 = vsel %vm480, %v468, 0
      %529 = vmatprep.subr.mxu0 0.0
      %530 = vmatpush1.msra.mxu0 0.0
      %531 = vmatprep.subr.mxu0 0.0
      %532 = vmatpush1.msra.mxu0 0.0
      %533 = vmatprep.subr.mxu0 0.0
      %534 = vmatpush1.msra.mxu0 0.0
      %535 = vmatprep.subr.mxu0 0.0
      %536 = vmatpush1.msra.mxu0 0.0
      %537 = vmatprep.subr.mxu0 0.0
      %538 = vmatpush1.msra.mxu0 0.0
      %539 = vmatprep.subr.mxu0 0.0
      %540 = vmatpush1.msra.mxu0 0.0
      %541 = vmatprep.subr.mxu0 0.0
      %542 = vmatpush1.msra.mxu0 0.0
      %543 = vmatprep.subr.mxu0 0.0
      %544 = vmatpush1.msra.mxu0 0.0
      %545 = vmatprep.subr.mxu0 0.0
      %546 = vmatpush1.msra.mxu0 0.0
      %547 = vmatprep.subr.mxu0 0.0
      %548 = vmatpush1.msra.mxu0 0.0
      %549 = vmatprep.subr.mxu0 0.0
      %550 = vmatpush1.msra.mxu0 0.0
      %551 = vmatprep.subr.mxu0 0.0
      %552 = vmatpush1.msra.mxu0 0.0
      %553 = vmatprep.subr.mxu0 0.0
      %554 = vmatpush1.msra.mxu0 %v472
      %555 = vmatprep.subr.mxu0 0.0
      %556 = vmatpush1.msra.mxu0 %v471
      %557 = vmatprep.subr.mxu0 0.0
      %558 = vmatpush1.msra.mxu0 %v470
      %559 = vmatprep.subr.mxu0 0.0
      %560 = vmatpush1.msra.mxu0 %v469
      %561 = vmatprep.subr.mxu0 0.0
      %562 = vmatpush2.msra.mxu0 0.0
      %563 = vmatprep.subr.mxu0 0.0
      %564 = vmatpush2.msra.mxu0 0.0
      %565 = vmatprep.subr.mxu0 0.0
      %566 = vmatpush2.msra.mxu0 0.0
      %567 = vmatprep.subr.mxu0 0.0
      %568 = vmatpush2.msra.mxu0 0.0
      %569 = vmatprep.subr.mxu0 0.0
      %570 = vmatpush2.msra.mxu0 0.0
      %571 = vmatprep.subr.mxu0 0.0
      %572 = vmatpush2.msra.mxu0 0.0
      %573 = vmatprep.subr.mxu0 0.0
      %574 = vmatpush2.msra.mxu0 0.0
      %575 = vmatprep.subr.mxu0 0.0
      %576 = vmatpush2.msra.mxu0 0.0
      %577 = vmatprep.subr.mxu0 0.0
      %578 = vmatpush2.msra.mxu0 0.0
      %579 = vmatprep.subr.mxu0 0.0
      %580 = vmatpush2.msra.mxu0 0.0
      %581 = vmatprep.subr.mxu0 0.0
      %582 = vmatpush2.msra.mxu0 0.0
      %583 = vmatprep.subr.mxu0 0.0
      %584 = vmatpush2.msra.mxu0 0.0
      %585 = vmatprep.subr.mxu0 0.0
      %586 = vmatpush2.msra.mxu0 0.0
      %587 = vmatprep.subr.mxu0 0.0
      %588 = vmatpush2.msra.mxu0 0.0
      %589 = vmatprep.subr.mxu0 0.0
      %590 = vmatpush2.msra.mxu0 0.0
      %591 = vmatprep.subr.mxu0 0.0
      %592 = vmatpush2.msra.mxu0 0.0
      %593 = vmatprep.mubr.f32.mxu0 0.0
      %594 = vmatmul.mubr.f32.gmra.mxu0 %v482
      %v595 = vpop.f32.mrf.mxu0
      %v596 = vadd.f32 %v478, %v595
      %v597 = vpop.f32.mrf.mxu0
      %598 = vmatprep.mubr.f32.mxu0 0.0
      %599 = vmatmul.mubr.f32.gmra.mxu0 %v485
      %v600 = vpop.f32.mrf.mxu0
      %v601 = vadd.f32 %v478, %v600
      %v602 = vpop.f32.mrf.mxu0
      %603 = vmatprep.mubr.f32.mxu0 0.0
      %604 = vmatmul.mubr.f32.gmra.mxu0 %v488
      %v605 = vpop.f32.mrf.mxu0
      %v606 = vadd.f32 %v478, %v605
      %v607 = vpop.f32.mrf.mxu0
      %608 = vmatprep.mubr.f32.mxu0 0.0
      %609 = vmatmul.mubr.f32.gmra.mxu0 %v491
      %v610 = vpop.f32.mrf.mxu0
      %v611 = vadd.f32 %v478, %v610
      %v612 = vpop.f32.mrf.mxu0
      %613 = vmatprep.mubr.f32.mxu0 0.0
      %614 = vmatmul.mubr.f32.gmra.mxu0 %v494
      %v615 = vpop.f32.mrf.mxu0
      %v616 = vadd.f32 %v478, %v615
      %v617 = vpop.f32.mrf.mxu0
      %618 = vmatprep.mubr.f32.mxu0 0.0
      %619 = vmatmul.mubr.f32.gmra.mxu0 %v497
      %v620 = vpop.f32.mrf.mxu0
      %v621 = vadd.f32 %v478, %v620
      %v622 = vpop.f32.mrf.mxu0
      %623 = vmatprep.mubr.f32.mxu0 0.0
      %624 = vmatmul.mubr.f32.gmra.mxu0 %v500
      %v625 = vpop.f32.mrf.mxu0
      %v626 = vadd.f32 %v478, %v625
      %v627 = vpop.f32.mrf.mxu0
      %628 = vmatprep.mubr.f32.mxu0 0.0
      %629 = vmatmul.mubr.f32.gmra.mxu0 %v503
      %v630 = vpop.f32.mrf.mxu0
      %v631 = vadd.f32 %v478, %v630
      %v632 = vpop.f32.mrf.mxu0
      %633 = vmatprep.mubr.f32.mxu0 0.0
      %634 = vmatmul.mubr.f32.gmra.mxu0 %v506
      %v635 = vpop.f32.mrf.mxu0
      %v636 = vadd.f32 %v478, %v635
      %v637 = vpop.f32.mrf.mxu0
      %638 = vmatprep.mubr.f32.mxu0 0.0
      %639 = vmatmul.mubr.f32.gmra.mxu0 %v509
      %v640 = vpop.f32.mrf.mxu0
      %v641 = vadd.f32 %v478, %v640
      %v642 = vpop.f32.mrf.mxu0
      %643 = vmatprep.mubr.f32.mxu0 0.0
      %644 = vmatmul.mubr.f32.gmra.mxu0 %v512
      %v645 = vpop.f32.mrf.mxu0
      %v646 = vadd.f32 %v478, %v645
      %v647 = vpop.f32.mrf.mxu0
      %648 = vmatprep.mubr.f32.mxu0 0.0
      %649 = vmatmul.mubr.f32.gmra.mxu0 %v515
      %v650 = vpop.f32.mrf.mxu0
      %v651 = vadd.f32 %v478, %v650
      %v652 = vpop.f32.mrf.mxu0
      %653 = vmatprep.mubr.f32.mxu0 0.0
      %654 = vmatmul.mubr.f32.gmra.mxu0 %v518
      %v655 = vpop.f32.mrf.mxu0
      %v656 = vadd.f32 %v478, %v655
      %v657 = vpop.f32.mrf.mxu0
      %658 = vmatprep.mubr.f32.mxu0 0.0
      %659 = vmatmul.mubr.f32.gmra.mxu0 %v521
      %v660 = vpop.f32.mrf.mxu0
      %v661 = vadd.f32 %v478, %v660
      %v662 = vpop.f32.mrf.mxu0
      %663 = vmatprep.mubr.f32.mxu0 0.0
      %664 = vmatmul.mubr.f32.gmra.mxu0 %v524
      %v665 = vpop.f32.mrf.mxu0
      %v666 = vadd.f32 %v478, %v665
      %v667 = vpop.f32.mrf.mxu0
      %668 = vmatprep.mubr.f32.mxu0 0.0
      %669 = vmatmul.mubr.f32.gmra.mxu0 %v527
      %v670 = vpop.f32.mrf.mxu0
      %v671 = vadd.f32 %v478, %v670
      %v672 = vpop.f32.mrf.mxu0
      %673 = vdwg.mxu0
      %v674 = vmax.f32 %v596, 0.0
      %v675 = vmax.f32 %v601, 0.0
      %v676 = vmax.f32 %v606, 0.0
      %v677 = vmax.f32 %v611, 0.0
      %v678 = vmax.f32 %v616, 0.0
      %v679 = vmax.f32 %v621, 0.0
      %v680 = vmax.f32 %v626, 0.0
      %v681 = vmax.f32 %v631, 0.0
      %v682 = vmax.f32 %v636, 0.0
      %v683 = vmax.f32 %v641, 0.0
      %v684 = vmax.f32 %v646, 0.0
      %v685 = vmax.f32 %v651, 0.0
      %v686 = vmax.f32 %v656, 0.0
      %v687 = vmax.f32 %v661, 0.0
      %v688 = vmax.f32 %v666, 0.0
      %v689 = vmax.f32 %v671, 0.0
      %vm690 = vcmask 130048
      %691 = vst.msk [vmem:[%s226] sm:$0xff] %vm690, %v674
      %692 = vst.msk [vmem:[%s226 + $0x8] sm:$0xff] %vm690, %v675
      %693 = vst.msk [vmem:[%s226 + $0x10] sm:$0xff] %vm690, %v676
      %694 = vst.msk [vmem:[%s226 + $0x18] sm:$0xff] %vm690, %v677
      %695 = vst.msk [vmem:[%s226 + $0x20] sm:$0xff] %vm690, %v678
      %696 = vst.msk [vmem:[%s226 + $0x28] sm:$0xff] %vm690, %v679
      %697 = vst.msk [vmem:[%s226 + $0x30] sm:$0xff] %vm690, %v680
      %698 = vst.msk [vmem:[%s226 + $0x38] sm:$0xff] %vm690, %v681
      %699 = vst.msk [vmem:[%s226 + $0x40] sm:$0xff] %vm690, %v682
      %700 = vst.msk [vmem:[%s226 + $0x48] sm:$0xff] %vm690, %v683
      %701 = vst.msk [vmem:[%s226 + $0x50] sm:$0xff] %vm690, %v684
      %702 = vst.msk [vmem:[%s226 + $0x58] sm:$0xff] %vm690, %v685
      %703 = vst.msk [vmem:[%s226 + $0x60] sm:$0xff] %vm690, %v686
      %704 = vst.msk [vmem:[%s226 + $0x68] sm:$0xff] %vm690, %v687
      %705 = vst.msk [vmem:[%s226 + $0x70] sm:$0xff] %vm690, %v688
      %706 = vst.msk [vmem:[%s226 + $0x78] sm:$0xff] %vm690, %v689
      %s707 = smul.u32 16, %s16
      %p708 = scmp.lt.s32.totalorder %s707, 31
      %s709 = scalar_select %p708, %s707, 31
      %s710 = smul.addr %s709, 8
      %s711 = scalar_lea.vmem %s5, %s710
      // Predicated region
      $region41: #{tpu_custom_call.1} parent=39 // pred_check
        %p712 = pneg %p144
      $region42: #{tpu_custom_call.1} parent=39 // pred_check_branch
        %714 = sbr.rel (%p712) target = $region44
      $region43: #{tpu_custom_call.1} parent=39 // pred_region
        %s715 = smul.u32 16, %s16
      $region44: #{tpu_custom_call.1} parent=39 // pred_fallthru
        _
    $region40: #{tpu_custom_call.1} parent=5 // pred_fallthru
      _
    %p716 = scmp.le.s32.totalorder 2, %s11
    // Predicated region
    $region45: #{tpu_custom_call.1} parent=5 // pred_check
      %p717 = pneg %p716
    $region46: #{tpu_custom_call.1} parent=5 // pred_check_branch
      %719 = sbr.rel (%p717) target = $region48
    $region47: #{tpu_custom_call.1} parent=5 // pred_region
      %s720 = ssub.s32 %s11, 2
      // Predicated region
      $region49: #{tpu_custom_call.1} parent=47 // pred_check
        %p721 = pneg %p150
      $region50: #{tpu_custom_call.1} parent=47 // pred_check_branch
        %723 = sbr.rel (%p721) target = $region52
      $region51: #{tpu_custom_call.1} parent=47 // pred_region
        %s724 = smul.u32 16, %s17
        %p725 = scmp.lt.s32.totalorder %s724, 31
        %s726 = scalar_select %p725, %s724, 31
        %s727 = smul.addr %s726, 8
        %s728 = scalar_lea.vmem %s5, %s727
      $region52: #{tpu_custom_call.1} parent=47 // pred_fallthru
        _
    $region48: #{tpu_custom_call.1} parent=5 // pred_fallthru
      _
  $region6: #{tpu_custom_call.1} parent=0 // loop_footer
    %s15 = sadd.s32 1, %s11
  $region7: #{tpu_custom_call.1} parent=0 // loop_footer_branch
    %10 = sbr.rel target = $region3
  $region8: #{tpu_custom_call.1} parent=0 // loop_exit
    _

</llo_original>
